<compile_context>
chip_gen: v5e
topology: v5e:2x2
jax: 0.10.0
libtpu: 0.0.40
codegen_flags: <defaults>
</compile_context>

<pallas_src>
import functools

import jax
import jax.numpy as jnp
from jax import lax
from jax.experimental import pallas as pl
from jax.experimental.pallas import tpu as pltpu


def imgcropper_kernel(pts_ref, img_ref, out_ref, *, att_num, temp, tile_h,
                      inv_hm1, inv_wm1):
    # pts_ref : (B * att_num * 2,) f32 in SMEM, layout (i0, j0, i1, j1, ...) per batch
    # img_ref, out_ref : (1, C, TILE_H, W) f32 blocks in VMEM
    b = pl.program_id(0)
    hb = pl.program_id(1)
    _, _, TH, W = img_ref.shape

    # In-kernel coordinate grid (== torch.linspace(0, 1, H/W)): i only depends
    # on the sublane (row) axis, j only on the lane (col) axis -> no div/mod.
    row_i = lax.broadcasted_iota(jnp.int32, (TH, W), 0) + hb * tile_h
    col_i = lax.broadcasted_iota(jnp.int32, (TH, W), 1)
    ci = row_i.astype(jnp.float32) * inv_hm1      # (TH, W)
    cj = col_i.astype(jnp.float32) * inv_wm1      # (TH, W)

    base = b * (2 * att_num)
    neg_inv_temp = -1.0 / temp
    wsum = jnp.zeros((TH, W), jnp.float32)
    for a in range(att_num):                      # static unroll; dense EUP work
        pi = pts_ref[base + 2 * a]                # scalar reads from SMEM
        pj = pts_ref[base + 2 * a + 1]
        di = pi - ci                              # scalar - vector broadcast (VPU)
        dj = pj - cj
        dist = jnp.sqrt(di * di + dj * dj)        # Euclidean distance (EUP)
        wsum = wsum + jnp.exp(dist * neg_inv_temp)

    # Same attention map for every channel; C is a leading block dim so this is
    # a cheap broadcast across full (TH, W) vreg slabs.
    out_ref[...] = img_ref[...] * wsum[None, None, :, :]


def _pick_tile_h(H, W, C, target_bytes=1 << 20):
    """Largest TILE_H (multiple of 8, dividing H) with a block of <= ~1 MiB."""
    if H % 8 != 0:
        return H                                   # full-dim block (Mosaic masks)
    best = 8
    for cand in range(8, H + 1, 8):
        if H % cand == 0 and C * cand * W * 4 <= target_bytes:
            best = cand
    return best


def imgcropper_forward(img, pts, *, att_num, temp):
    """Pallas Imgcropper forward. img: (B, 3, H, W), pts: reshapeable to (B, att_num, 2)."""
    B, C, H, W = img.shape
    assert C == 3, "Imgcropper hard-codes 3 image channels"

    img = img.astype(jnp.float32)
    pts_flat = pts.reshape(B * att_num * 2).astype(jnp.float32)

    tile_h = _pick_tile_h(H, W, C)
    grid = (B, H // tile_h)

    kernel = functools.partial(
        imgcropper_kernel,
        att_num=int(att_num),
        temp=float(temp),
        tile_h=int(tile_h),
        inv_hm1=(1.0 / (H - 1)) if H > 1 else 0.0,
        inv_wm1=(1.0 / (W - 1)) if W > 1 else 0.0,
    )

    cost = pl.CostEstimate(
        flops=int(B * att_num * H * W * 7 + B * C * H * W),
        transcendentals=int(2 * B * att_num * H * W),          # sqrt + exp
        bytes_accessed=int(4 * (2 * B * C * H * W + 2 * B * att_num)),
    )

    out = pl.pallas_call(
        kernel,
        out_shape=jax.ShapeDtypeStruct((B, C, H, W), jnp.float32),
        grid=grid,
        in_specs=[
            # attention points: whole array resident in SMEM, scalar-indexed
            pl.BlockSpec(memory_space=pltpu.MemorySpace.SMEM),
            # image: per-(batch, row-tile) block; W block == full dim
            pl.BlockSpec((1, C, tile_h, W), lambda b, h: (b, 0, h, 0)),
        ],
        out_specs=pl.BlockSpec((1, C, tile_h, W), lambda b, h: (b, 0, h, 0)),
        compiler_params=pltpu.CompilerParams(
            dimension_semantics=("parallel", "parallel"),       # megacore both axes
        ),
        cost_estimate=cost,
    )(pts_flat, img)

    return out


def imgcropper_reference(img, pts, *, att_num, temp):
    """Pure-JAX reference mirroring the PyTorch Imgcropper.forward."""
    B, C, H, W = img.shape
    HW = H * W
    i_lin = jnp.linspace(0.0, 1.0, H, dtype=jnp.float32)
    j_lin = jnp.linspace(0.0, 1.0, W, dtype=jnp.float32)
    ig, jg = jnp.meshgrid(i_lin, j_lin, indexing="ij")
    coord = jnp.stack([ig, jg], axis=-1).reshape(HW, 2)                 # (HW, 2)
    att = pts.reshape(B, att_num, 1, 2)                                 # (B, A, 1, 2)
    dist = jnp.sqrt(jnp.sum((att - coord[None, None]) ** 2, axis=-1))   # (B, A, HW)
    wsum = jnp.sum(jnp.exp(-dist / temp), axis=1)                       # (B, HW)
    return img * wsum.reshape(B, 1, H, W)


if __name__ == "__main__":
    B, C, H, W = 2, 3, 16, 16
    att_num, temp = 5, 0.1

    key = jax.random.PRNGKey(0)
    k_img, k_pts = jax.random.split(key)
    img = jax.random.normal(k_img, (B, C, H, W), jnp.float32)
    pts = jax.random.uniform(k_pts, (B, att_num * 2), dtype=jnp.float32)  # att pts in [0, 1]

    out = jax.block_until_ready(imgcropper_forward(img, pts, att_num=att_num, temp=temp))

    ref = imgcropper_reference(img, pts, att_num=att_num, temp=temp)
    assert out.shape == ref.shape and out.dtype == ref.dtype
    max_err = float(jnp.max(jnp.abs(out - ref)))
    assert max_err < 1e-4, f"max abs err {max_err}"

    print("KERNEL_OK")
</pallas_src>

<mosaic_0001>
module attributes {stable_mosaic.version = 11 : i64} {
  func.func @imgcropper_kernel(%arg0: i32, %arg1: i32, %arg2: memref<20xf32, #tpu.memory_space<smem>>, %arg3: memref<1x3x16x16xf32, #tpu.memory_space<vmem>>, %arg4: memref<1x3x16x16xf32, #tpu.memory_space<vmem>>) attributes {dimension_semantics = [#tpu.dimension_semantics<parallel>, #tpu.dimension_semantics<parallel>], iteration_bounds = array<i64: 2, 1>, scalar_prefetch = 0 : i64, scratch_operands = 0 : i64, tpu.core_type = #tpu.core_type<tc>, window_params = [{transform_indices = @transform_0, window_bounds = array<i64: 20>}, {transform_indices = @transform_1, window_bounds = array<i64: 1, 3, 16, 16>}, {transform_indices = @transform_2, window_bounds = array<i64: 1, 3, 16, 16>}]} {
    %0 = tpu.iota {dimensions = array<i32: 0>} : vector<16x16xi32>
    %c16_i32 = arith.constant 16 : i32
    %1 = arith.muli %arg1, %c16_i32 : i32
    %2 = vector.broadcast %1 : i32 to vector<16x16xi32>
    %3 = arith.addi %0, %2 : vector<16x16xi32>
    %4 = tpu.iota {dimensions = array<i32: 1>} : vector<16x16xi32>
    %5 = arith.sitofp %3 : vector<16x16xi32> to vector<16x16xf32>
    %cst = arith.constant 0.0666666701 : f32
    %6 = vector.broadcast %cst : f32 to vector<16x16xf32>
    %7 = arith.mulf %5, %6 : vector<16x16xf32>
    %8 = arith.sitofp %4 : vector<16x16xi32> to vector<16x16xf32>
    %cst_0 = arith.constant 0.0666666701 : f32
    %9 = vector.broadcast %cst_0 : f32 to vector<16x16xf32>
    %10 = arith.mulf %8, %9 : vector<16x16xf32>
    %c10_i32 = arith.constant 10 : i32
    %11 = arith.muli %arg0, %c10_i32 : i32
    %cst_1 = arith.constant 0.000000e+00 : f32
    %12 = vector.broadcast %cst_1 : f32 to vector<16x16xf32>
    %c0_i32 = arith.constant 0 : i32
    %13 = arith.addi %11, %c0_i32 : i32
    %14 = arith.index_cast %13 : i32 to index
    %15 = memref.load %arg2[%14] : memref<20xf32, #tpu.memory_space<smem>>
    %c0_i32_2 = arith.constant 0 : i32
    %16 = arith.addi %11, %c0_i32_2 : i32
    %c1_i32 = arith.constant 1 : i32
    %17 = arith.addi %16, %c1_i32 : i32
    %18 = arith.index_cast %17 : i32 to index
    %19 = memref.load %arg2[%18] : memref<20xf32, #tpu.memory_space<smem>>
    %20 = vector.broadcast %15 : f32 to vector<16x16xf32>
    %21 = arith.subf %20, %7 : vector<16x16xf32>
    %22 = vector.broadcast %19 : f32 to vector<16x16xf32>
    %23 = arith.subf %22, %10 : vector<16x16xf32>
    %24 = arith.mulf %21, %21 : vector<16x16xf32>
    %25 = arith.mulf %23, %23 : vector<16x16xf32>
    %26 = arith.addf %24, %25 : vector<16x16xf32>
    %27 = math.sqrt %26 : vector<16x16xf32>
    %cst_3 = arith.constant -1.000000e+01 : f32
    %28 = vector.broadcast %cst_3 : f32 to vector<16x16xf32>
    %29 = arith.mulf %27, %28 : vector<16x16xf32>
    %30 = math.exp %29 : vector<16x16xf32>
    %31 = arith.addf %12, %30 : vector<16x16xf32>
    %c2_i32 = arith.constant 2 : i32
    %32 = arith.addi %11, %c2_i32 : i32
    %33 = arith.index_cast %32 : i32 to index
    %34 = memref.load %arg2[%33] : memref<20xf32, #tpu.memory_space<smem>>
    %c2_i32_4 = arith.constant 2 : i32
    %35 = arith.addi %11, %c2_i32_4 : i32
    %c1_i32_5 = arith.constant 1 : i32
    %36 = arith.addi %35, %c1_i32_5 : i32
    %37 = arith.index_cast %36 : i32 to index
    %38 = memref.load %arg2[%37] : memref<20xf32, #tpu.memory_space<smem>>
    %39 = vector.broadcast %34 : f32 to vector<16x16xf32>
    %40 = arith.subf %39, %7 : vector<16x16xf32>
    %41 = vector.broadcast %38 : f32 to vector<16x16xf32>
    %42 = arith.subf %41, %10 : vector<16x16xf32>
    %43 = arith.mulf %40, %40 : vector<16x16xf32>
    %44 = arith.mulf %42, %42 : vector<16x16xf32>
    %45 = arith.addf %43, %44 : vector<16x16xf32>
    %46 = math.sqrt %45 : vector<16x16xf32>
    %cst_6 = arith.constant -1.000000e+01 : f32
    %47 = vector.broadcast %cst_6 : f32 to vector<16x16xf32>
    %48 = arith.mulf %46, %47 : vector<16x16xf32>
    %49 = math.exp %48 : vector<16x16xf32>
    %50 = arith.addf %31, %49 : vector<16x16xf32>
    %c4_i32 = arith.constant 4 : i32
    %51 = arith.addi %11, %c4_i32 : i32
    %52 = arith.index_cast %51 : i32 to index
    %53 = memref.load %arg2[%52] : memref<20xf32, #tpu.memory_space<smem>>
    %c4_i32_7 = arith.constant 4 : i32
    %54 = arith.addi %11, %c4_i32_7 : i32
    %c1_i32_8 = arith.constant 1 : i32
    %55 = arith.addi %54, %c1_i32_8 : i32
    %56 = arith.index_cast %55 : i32 to index
    %57 = memref.load %arg2[%56] : memref<20xf32, #tpu.memory_space<smem>>
    %58 = vector.broadcast %53 : f32 to vector<16x16xf32>
    %59 = arith.subf %58, %7 : vector<16x16xf32>
    %60 = vector.broadcast %57 : f32 to vector<16x16xf32>
    %61 = arith.subf %60, %10 : vector<16x16xf32>
    %62 = arith.mulf %59, %59 : vector<16x16xf32>
    %63 = arith.mulf %61, %61 : vector<16x16xf32>
    %64 = arith.addf %62, %63 : vector<16x16xf32>
    %65 = math.sqrt %64 : vector<16x16xf32>
    %cst_9 = arith.constant -1.000000e+01 : f32
    %66 = vector.broadcast %cst_9 : f32 to vector<16x16xf32>
    %67 = arith.mulf %65, %66 : vector<16x16xf32>
    %68 = math.exp %67 : vector<16x16xf32>
    %69 = arith.addf %50, %68 : vector<16x16xf32>
    %c6_i32 = arith.constant 6 : i32
    %70 = arith.addi %11, %c6_i32 : i32
    %71 = arith.index_cast %70 : i32 to index
    %72 = memref.load %arg2[%71] : memref<20xf32, #tpu.memory_space<smem>>
    %c6_i32_10 = arith.constant 6 : i32
    %73 = arith.addi %11, %c6_i32_10 : i32
    %c1_i32_11 = arith.constant 1 : i32
    %74 = arith.addi %73, %c1_i32_11 : i32
    %75 = arith.index_cast %74 : i32 to index
    %76 = memref.load %arg2[%75] : memref<20xf32, #tpu.memory_space<smem>>
    %77 = vector.broadcast %72 : f32 to vector<16x16xf32>
    %78 = arith.subf %77, %7 : vector<16x16xf32>
    %79 = vector.broadcast %76 : f32 to vector<16x16xf32>
    %80 = arith.subf %79, %10 : vector<16x16xf32>
    %81 = arith.mulf %78, %78 : vector<16x16xf32>
    %82 = arith.mulf %80, %80 : vector<16x16xf32>
    %83 = arith.addf %81, %82 : vector<16x16xf32>
    %84 = math.sqrt %83 : vector<16x16xf32>
    %cst_12 = arith.constant -1.000000e+01 : f32
    %85 = vector.broadcast %cst_12 : f32 to vector<16x16xf32>
    %86 = arith.mulf %84, %85 : vector<16x16xf32>
    %87 = math.exp %86 : vector<16x16xf32>
    %88 = arith.addf %69, %87 : vector<16x16xf32>
    %c8_i32 = arith.constant 8 : i32
    %89 = arith.addi %11, %c8_i32 : i32
    %90 = arith.index_cast %89 : i32 to index
    %91 = memref.load %arg2[%90] : memref<20xf32, #tpu.memory_space<smem>>
    %c8_i32_13 = arith.constant 8 : i32
    %92 = arith.addi %11, %c8_i32_13 : i32
    %c1_i32_14 = arith.constant 1 : i32
    %93 = arith.addi %92, %c1_i32_14 : i32
    %94 = arith.index_cast %93 : i32 to index
    %95 = memref.load %arg2[%94] : memref<20xf32, #tpu.memory_space<smem>>
    %96 = vector.broadcast %91 : f32 to vector<16x16xf32>
    %97 = arith.subf %96, %7 : vector<16x16xf32>
    %98 = vector.broadcast %95 : f32 to vector<16x16xf32>
    %99 = arith.subf %98, %10 : vector<16x16xf32>
    %100 = arith.mulf %97, %97 : vector<16x16xf32>
    %101 = arith.mulf %99, %99 : vector<16x16xf32>
    %102 = arith.addf %100, %101 : vector<16x16xf32>
    %103 = math.sqrt %102 : vector<16x16xf32>
    %cst_15 = arith.constant -1.000000e+01 : f32
    %104 = vector.broadcast %cst_15 : f32 to vector<16x16xf32>
    %105 = arith.mulf %103, %104 : vector<16x16xf32>
    %106 = math.exp %105 : vector<16x16xf32>
    %107 = arith.addf %88, %106 : vector<16x16xf32>
    %c0 = arith.constant 0 : index
    %c0_16 = arith.constant 0 : index
    %c0_17 = arith.constant 0 : index
    %c0_18 = arith.constant 0 : index
    %108 = vector.load %arg3[%c0, %c0_16, %c0_17, %c0_18] : memref<1x3x16x16xf32, #tpu.memory_space<vmem>>, vector<1x3x16x16xf32>
    %109 = vector.shape_cast %107 : vector<16x16xf32> to vector<1x1x16x16xf32>
    %110 = vector.broadcast %109 : vector<1x1x16x16xf32> to vector<1x3x16x16xf32>
    %111 = arith.mulf %108, %110 : vector<1x3x16x16xf32>
    %c0_19 = arith.constant 0 : index
    %c0_20 = arith.constant 0 : index
    %c0_21 = arith.constant 0 : index
    %c0_22 = arith.constant 0 : index
    %112 = vector.load %arg4[%c0_19, %c0_20, %c0_21, %c0_22] : memref<1x3x16x16xf32, #tpu.memory_space<vmem>>, vector<1x3x16x16xf32>
    tpu.vector_store %arg4[%c0_19, %c0_20, %c0_21, %c0_22], %111 {strides = array<i32>} : memref<1x3x16x16xf32, #tpu.memory_space<vmem>>, vector<1x3x16x16xf32>,
    return
  }
  func.func @transform_0(%arg0: i32, %arg1: i32) -> i32 {
    %c0_i32 = arith.constant 0 : i32
    %c0_i32_0 = arith.constant 0 : i32
    return %c0_i32 : i32
  }
  func.func @transform_1(%arg0: i32, %arg1: i32) -> (i32, i32, i32, i32) {
    %c0_i32 = arith.constant 0 : i32
    %c0_i32_0 = arith.constant 0 : i32
    %c0_i32_1 = arith.constant 0 : i32
    return %arg0, %c0_i32, %arg1, %c0_i32_0 : i32, i32, i32, i32
  }
  func.func @transform_2(%arg0: i32, %arg1: i32) -> (i32, i32, i32, i32) {
    %c0_i32 = arith.constant 0 : i32
    %c0_i32_0 = arith.constant 0 : i32
    %c0_i32_1 = arith.constant 0 : i32
    return %arg0, %c0_i32, %arg1, %c0_i32_0 : i32, i32, i32, i32
  }
}

</mosaic_0001>

<llo_original>
// kernel: tpu_custom_call.1
$region0: #{tpu_custom_call.1}
  #allocation0 [shape = 'u32[]', space=smem, size = 0x4, offset = 0x4, fixed_abs, tag = 'smem constant byte address 0x4 - core index']
  #allocation1 [shape = 'u32[72,128]{1,0:T(1,128)}', space=vmem, size = 0x9000, scoped, tag = 'internal scratch']
  %s0 = inlined_call_operand.hbm [shape: f32[20], index: 0, kind: input, shape index: {}]
  %s1 = inlined_call_operand.hbm [shape: f32[2,3,16,16], index: 1, kind: input, shape index: {}]
  %s2 = inlined_call_operand.hbm [shape: f32[2,3,16,16], index: 2, kind: output, shape index: {}]
  %s3 = sld [smem:[#allocation0]]
  $region49: #{tpu_custom_call.1} parent=0
    _
  %s5 = ssub.s32 1, %s3
  %s6 = scalar_select 0, %s5, %s3
  $region1: #{tpu_custom_call.1} parent=0
    #allocation2 [shape = 'u8[512]{0}', space=smem, size = 0x200, scoped, tag = 'input window, operand 0, single buffered']
    #allocation3 [shape = 's32[2]{0}', space=sflag, size = 0x8, scoped, tag = 'scoped memory for tpu_custom_call.1']
    #allocation4 [shape = 's32[2]{0}', space=sflag, size = 0x8, scoped, tag = 'scoped memory for tpu_custom_call.1']
    #allocation5 [shape = 's32[2]{0}', space=sflag, size = 0x8, scoped, tag = 'scoped memory for tpu_custom_call.1']
    #allocation6 [shape = 'u8[49152]{0}', space=vmem, size = 0xc000, scoped, tag = 'input window, operand 1']
    #allocation7 [shape = 'u8[49152]{0}', space=vmem, size = 0xc000, scoped, tag = 'output window, operand 0']
    %7 = vsyncpa [#allocation5], 0
    %8 = vsyncpa [#allocation3], 0
    %s9 = scalar_lea.sflag [#allocation3], 1
    %10 = vsyncpa %s9, 0
    %11 = vsyncpa [#allocation4], 0
    %s12 = scalar_lea.sflag [#allocation4], 1
    %13 = vsyncpa %s12, 0
    loop: start=0, step=1, limit=4
    $region2: #{tpu_custom_call.1} parent=1 // loop_pre_header
      _
    $region3: #{tpu_custom_call.1} parent=1 // loop_header
      %s15 = sphi 0, %s19
      %p16 = scmp.ge.s32.totalorder %s15, 4
      %s22 = sphi 0, %s34
      %s23 = sphi 0, %s30
      %s24 = sphi 0, %s22
      %s25 = sphi 0, %s23
      %s26 = sphi 0, %s24
      %s27 = sphi 0, %s25
      %s35 = sphi 0, %s35
      %s37 = sphi 0, %s35
      %s38 = sphi 0, %s37
      %s52 = sphi 0, %s38
      %s60 = sphi 0, %s62
      %s63 = sphi 0, %s60
      %s64 = sphi 0, %s63
      %s80 = sphi 0, %s64
      %s88 = sphi 0, %s90
      %s91 = sphi 0, %s88
      %s92 = sphi 0, %s91
      %s108 = sphi 0, %s92
    $region4: #{tpu_custom_call.1} parent=1 // loop_header_branch
      %18 = sbr.rel (%p16) target = $region8
    $region5: #{tpu_custom_call.1} parent=1 // loop_body
      %s20 = ssub.s32 %s15, 1
      %s21 = ssub.s32 %s15, 2
      %s28 = sadd.s32 1, %s23
      %p29 = scmp.ge.s32.totalorder %s28, 1
      %s30 = scalar_select %p29, 0, %s28
      %s31 = sadd.s32 1, %s22
      %s32 = scalar_select %p29, %s31, %s22
      %p33 = scmp.ge.s32.totalorder %s32, 2
      %s34 = scalar_select %p33, 0, %s32
      %s36 = sadd.s32 %s35, 1
      %p39 = scmp.eq.s32.totalorder %s15, 1
      %p40 = scmp.ne.s32.totalorder %s35, %s37
      %p41 = scmp.eq.s32.totalorder %s15, 0
      %p42 = por %p40, %p41
      %p43 = scmp.ne.s32.totalorder %s35, %s37
      %p44 = scmp.eq.s32.totalorder %s20, 1
      %p45 = por %p43, %p44
      %p46 = scmp.ne.s32.totalorder %s37, %s38
      %p47 = scmp.eq.s32.totalorder %s20, 0
      %p48 = por %p46, %p47
      %p49 = scmp.ne.s32.totalorder %s37, %s38
      %p50 = scmp.eq.s32.totalorder %s21, 1
      %p51 = por %p49, %p50
      %p53 = scmp.ne.s32.totalorder %s38, %s52
      %p54 = scmp.eq.s32.totalorder %s21, 0
      %p55 = por %p53, %p54
      %s56 = ssub.s32 %s22, %s34
      %s57 = ssub.s32 %s23, %s30
      %s58 = sor.u32 %s56, %s57
      %p59 = scmp.eq.s32.totalorder %s58, 0
      %s61 = sadd.s32 %s60, 1
      %s62 = scalar_select %p59, %s60, %s61
      %p65 = pneg %p59
      %p66 = scmp.eq.s32.totalorder %s15, 1
      %p67 = por %p65, %p66
      %p68 = scmp.ne.s32.totalorder %s60, %s63
      %p69 = scmp.eq.s32.totalorder %s15, 0
      %p70 = por %p68, %p69
      %p71 = scmp.ne.s32.totalorder %s60, %s63
      %p72 = scmp.eq.s32.totalorder %s20, 1
      %p73 = por %p71, %p72
      %p74 = scmp.ne.s32.totalorder %s63, %s64
      %p75 = scmp.eq.s32.totalorder %s20, 0
      %p76 = por %p74, %p75
      %p77 = scmp.ne.s32.totalorder %s63, %s64
      %p78 = scmp.eq.s32.totalorder %s21, 1
      %p79 = por %p77, %p78
      %p81 = scmp.ne.s32.totalorder %s64, %s80
      %p82 = scmp.eq.s32.totalorder %s21, 0
      %p83 = por %p81, %p82
      %s84 = ssub.s32 %s22, %s34
      %s85 = ssub.s32 %s23, %s30
      %s86 = sor.u32 %s84, %s85
      %p87 = scmp.eq.s32.totalorder %s86, 0
      %s89 = sadd.s32 %s88, 1
      %s90 = scalar_select %p87, %s88, %s89
      %p93 = pneg %p87
      %p94 = scmp.eq.s32.totalorder %s15, 1
      %p95 = por %p93, %p94
      %p96 = scmp.ne.s32.totalorder %s88, %s91
      %p97 = scmp.eq.s32.totalorder %s15, 0
      %p98 = por %p96, %p97
      %p99 = scmp.ne.s32.totalorder %s88, %s91
      %p100 = scmp.eq.s32.totalorder %s20, 1
      %p101 = por %p99, %p100
      %p102 = scmp.ne.s32.totalorder %s91, %s92
      %p103 = scmp.eq.s32.totalorder %s20, 0
      %p104 = por %p102, %p103
      %p105 = scmp.ne.s32.totalorder %s91, %s92
      %p106 = scmp.eq.s32.totalorder %s21, 1
      %p107 = por %p105, %p106
      %p109 = scmp.ne.s32.totalorder %s92, %s108
      %p110 = scmp.eq.s32.totalorder %s21, 0
      %p111 = por %p109, %p110
      %p112 = scmp.le.s32.totalorder 1, %s15
      %p113 = scmp.lt.s32.totalorder %s15, 3
      %p114 = pnand %p112, %p113
      %p115 = pneg %p114
      // Predicated region
      $region9: #{tpu_custom_call.1} parent=5 // pred_check
        _
      $region10: #{tpu_custom_call.1} parent=5 // pred_check_branch
        %117 = sbr.rel (%p114) target = $region12
      $region11: #{tpu_custom_call.1} parent=5 // pred_region
        %s118 = ssub.s32 %s15, 1
        // Predicated region
        $region13: #{tpu_custom_call.1} parent=11 // pred_check
          %p119 = pneg %p48
        $region14: #{tpu_custom_call.1} parent=11 // pred_check_branch
          %121 = sbr.rel (%p119) target = $region16
        $region15: #{tpu_custom_call.1} parent=11 // pred_region
          %123 = vsyncadd [#allocation5], 0
          %s125 = sshll.u32 %s0, 4
          %s126 = int_to_ptr.hbm [resolvable:$true] %s125
          %128 = dma.hbm_to_smem %s126, 16, [#allocation2], [#allocation5]
        $region16: #{tpu_custom_call.1} parent=11 // pred_fallthru
          _
      $region12: #{tpu_custom_call.1} parent=5 // pred_fallthru
        _
      %p129 = scmp.lt.s32.totalorder %s15, 2
      // Predicated region
      $region17: #{tpu_custom_call.1} parent=5 // pred_check
        %p130 = pneg %p129
      $region18: #{tpu_custom_call.1} parent=5 // pred_check_branch
        %132 = sbr.rel (%p130) target = $region20
      $region19: #{tpu_custom_call.1} parent=5 // pred_region
        // Predicated region
        $region21: #{tpu_custom_call.1} parent=19 // pred_check
          %p133 = pneg %p70
        $region22: #{tpu_custom_call.1} parent=19 // pred_check_branch
          %135 = sbr.rel (%p133) target = $region24
        $region23: #{tpu_custom_call.1} parent=19 // pred_region
          %s136 = sand.u32 %s60, 1
          %s137 = scalar_lea.sflag [#allocation3], %s136
          %s138 = sand.u32 %s60, 1
          %s139 = smul.addr %s138, 48
          %s140 = scalar_lea.vmem [#allocation6], %s139
          %s141 = smul.u32 2, %s23
          %143 = vsyncadd %s137, 0
          %s144 = smul.addr %s22, 6
          %s145 = sadd.s32 %s141, %s144
          %s146 = smul.addr %s145, 8
          %s147 = scalar_lea.hbm %s1, %s146
          %s148 = sshll.u32 %s147, 4
          %s149 = int_to_ptr.hbm [resolvable:$true] %s148
          %s150 = sshll.u32 %s140, 4
          %s151 = int_to_ptr.vmem [resolvable:$true] %s150
          %156 = dma.hbm_to_vmem [thread:$0]  %s149, 768, %s151, %s137, 128, 128, 8
        $region24: #{tpu_custom_call.1} parent=19 // pred_fallthru
          _
      $region20: #{tpu_custom_call.1} parent=5 // pred_fallthru
        _
      %p157 = scmp.le.s32.totalorder 1, %s15
      %p158 = scmp.lt.s32.totalorder %s15, 3
      %p159 = pnand %p157, %p158
      %p160 = pneg %p159
      // Predicated region
      $region25: #{tpu_custom_call.1} parent=5 // pred_check
        _
      $region26: #{tpu_custom_call.1} parent=5 // pred_check_branch
        %162 = sbr.rel (%p159) target = $region28
      $region27: #{tpu_custom_call.1} parent=5 // pred_region
        %s163 = ssub.s32 %s15, 1
        // Predicated region
        $region29: #{tpu_custom_call.1} parent=27 // pred_check
          %p164 = pneg %p48
        $region30: #{tpu_custom_call.1} parent=27 // pred_check_branch
          %166 = sbr.rel (%p164) target = $region32
        $region31: #{tpu_custom_call.1} parent=27 // pred_region
          %168 = dma.done [#allocation5], 16
        $region32: #{tpu_custom_call.1} parent=27 // pred_fallthru
          _
        %s169 = sand.u32 %s63, 1
        %s170 = scalar_lea.sflag [#allocation3], %s169
        %s171 = sand.u32 %s63, 1
        %s172 = smul.addr %s171, 48
        %s173 = scalar_lea.vmem [#allocation6], %s172
        // Predicated region
        $region33: #{tpu_custom_call.1} parent=27 // pred_check
          %p174 = pneg %p76
        $region34: #{tpu_custom_call.1} parent=27 // pred_check_branch
          %176 = sbr.rel (%p174) target = $region36
        $region35: #{tpu_custom_call.1} parent=27 // pred_region
          %178 = dma.done %s170, 768
        $region36: #{tpu_custom_call.1} parent=27 // pred_fallthru
          _
        %179 = sfence
        %p180 = pneg %p48
        %p181 = pneg %p45
        %s182 = sand.u32 %s63, 1
        %s183 = scalar_lea.sflag [#allocation3], %s182
        %s184 = sand.u32 %s63, 1
        %s185 = smul.addr %s184, 48
        %s186 = scalar_lea.vmem [#allocation6], %s185
        %p187 = pneg %p76
        %p188 = pneg %p73
        %p189 = pneg %p104
        %p190 = pneg %p101
        %s191 = sand.u32 %s91, 1
        %s192 = scalar_lea.sflag [#allocation4], %s191
        %s193 = sand.u32 %s91, 1
        %s194 = smul.addr %s193, 48
        %s195 = scalar_lea.vmem [#allocation7], %s194
        %s196 = smul.u32 2, %s25
        %s197 = smul.u32 2, %s25
        %v198 = vlaneseq
        %v199 = vshrl.u32 %v198, 7
        %v200 = vadd.s32 %v199, 8
        %s201 = smul.u32 %s25, 16
        %v202 = vstv %s201
        %v203 = vadd.s32 %v199, %v202
        %v204 = vadd.s32 %v200, %v202
        %v205 = vlaneseq
        %v206 = vand.u32 %v205, 127
        %v207 = vcvt.s32.f32 %v203
        %v208 = vcvt.s32.f32 %v204
        %v209 = vmul.f32 %v207, 0.06666667
        %v210 = vmul.f32 %v208, 0.06666667
        %v211 = vcvt.s32.f32 %v206
        %v212 = vmul.f32 %v211, 0.06666667
        %s213 = smul.u32 %s24, 10
        %s214 = sld [smem:[#allocation2 + %s213]]
        %s215 = sadd.s32 %s213, 1
        %s216 = sld [smem:[#allocation2 + %s215]]
        %v217 = vstv %s214
        %v218 = vsub.f32 %v217, %v209
        %v219 = vsub.f32 %v217, %v210
        %v220 = vstv %s216
        %v221 = vsub.f32 %v220, %v212
        %v222 = vmul.f32 %v218, %v218
        %v223 = vmul.f32 %v219, %v219
        %v224 = vmul.f32 %v221, %v221
        %v225 = vadd.f32 %v222, %v224
        %v226 = vadd.f32 %v223, %v224
        %v227 = vrsqrt.pop %v225
        %v228 = vmul.f32 %v227, %v225
        %v229 = vmul.f32 %v228, %v227
        %v230 = vmul.f32 0.5, %v229
        %v231 = vsub.f32 1.5, %v230
        %v232 = vmul.f32 %v227, %v231
        %v233 = vmul.f32 %v225, %v232
        %vm234 = vcmp.eq.f32.partialorder %v225, inf
        %v235 = vsel %vm234, %v225, %v233
        %vm236 = vcmp.eq.f32.partialorder %v225, 0.0
        %v237 = vand.u32 %v225, 2147483648
        %v238 = vsel %vm236, %v237, %v235
        %v239 = vrsqrt.pop %v226
        %v240 = vmul.f32 %v239, %v226
        %v241 = vmul.f32 %v240, %v239
        %v242 = vmul.f32 0.5, %v241
        %v243 = vsub.f32 1.5, %v242
        %v244 = vmul.f32 %v239, %v243
        %v245 = vmul.f32 %v226, %v244
        %vm246 = vcmp.eq.f32.partialorder %v226, inf
        %v247 = vsel %vm246, %v226, %v245
        %vm248 = vcmp.eq.f32.partialorder %v226, 0.0
        %v249 = vand.u32 %v226, 2147483648
        %v250 = vsel %vm248, %v249, %v247
        %v251 = vmul.f32 %v238, -10.0
        %v252 = vmul.f32 %v250, -10.0
        %v253 = vmul.f32 %v251, 1.442695
        %v254 = vpow.pop %v253
        %v255 = vmul.f32 %v252, 1.442695
        %v256 = vpow.pop %v255
        %v257 = vadd.f32 %v254, 0.0
        %v258 = vadd.f32 %v256, 0.0
        %s259 = sadd.s32 %s213, 2
        %s260 = sld [smem:[#allocation2 + %s259]]
        %s261 = sadd.s32 %s213, 3
        %s262 = sld [smem:[#allocation2 + %s261]]
        %v263 = vstv %s260
        %v264 = vsub.f32 %v263, %v209
        %v265 = vsub.f32 %v263, %v210
        %v266 = vstv %s262
        %v267 = vsub.f32 %v266, %v212
        %v268 = vmul.f32 %v264, %v264
        %v269 = vmul.f32 %v265, %v265
        %v270 = vmul.f32 %v267, %v267
        %v271 = vadd.f32 %v268, %v270
        %v272 = vadd.f32 %v269, %v270
        %v273 = vrsqrt.pop %v271
        %v274 = vmul.f32 %v273, %v271
        %v275 = vmul.f32 %v274, %v273
        %v276 = vmul.f32 0.5, %v275
        %v277 = vsub.f32 1.5, %v276
        %v278 = vmul.f32 %v273, %v277
        %v279 = vmul.f32 %v271, %v278
        %vm280 = vcmp.eq.f32.partialorder %v271, inf
        %v281 = vsel %vm280, %v271, %v279
        %vm282 = vcmp.eq.f32.partialorder %v271, 0.0
        %v283 = vand.u32 %v271, 2147483648
        %v284 = vsel %vm282, %v283, %v281
        %v285 = vrsqrt.pop %v272
        %v286 = vmul.f32 %v285, %v272
        %v287 = vmul.f32 %v286, %v285
        %v288 = vmul.f32 0.5, %v287
        %v289 = vsub.f32 1.5, %v288
        %v290 = vmul.f32 %v285, %v289
        %v291 = vmul.f32 %v272, %v290
        %vm292 = vcmp.eq.f32.partialorder %v272, inf
        %v293 = vsel %vm292, %v272, %v291
        %vm294 = vcmp.eq.f32.partialorder %v272, 0.0
        %v295 = vand.u32 %v272, 2147483648
        %v296 = vsel %vm294, %v295, %v293
        %v297 = vmul.f32 %v284, -10.0
        %v298 = vmul.f32 %v296, -10.0
        %v299 = vmul.f32 %v297, 1.442695
        %v300 = vpow.pop %v299
        %v301 = vmul.f32 %v298, 1.442695
        %v302 = vpow.pop %v301
        %v303 = vadd.f32 %v257, %v300
        %v304 = vadd.f32 %v258, %v302
        %s305 = sadd.s32 %s213, 4
        %s306 = sld [smem:[#allocation2 + %s305]]
        %s307 = sadd.s32 %s213, 5
        %s308 = sld [smem:[#allocation2 + %s307]]
        %v309 = vstv %s306
        %v310 = vsub.f32 %v309, %v209
        %v311 = vsub.f32 %v309, %v210
        %v312 = vstv %s308
        %v313 = vsub.f32 %v312, %v212
        %v314 = vmul.f32 %v310, %v310
        %v315 = vmul.f32 %v311, %v311
        %v316 = vmul.f32 %v313, %v313
        %v317 = vadd.f32 %v314, %v316
        %v318 = vadd.f32 %v315, %v316
        %v319 = vrsqrt.pop %v317
        %v320 = vmul.f32 %v319, %v317
        %v321 = vmul.f32 %v320, %v319
        %v322 = vmul.f32 0.5, %v321
        %v323 = vsub.f32 1.5, %v322
        %v324 = vmul.f32 %v319, %v323
        %v325 = vmul.f32 %v317, %v324
        %vm326 = vcmp.eq.f32.partialorder %v317, inf
        %v327 = vsel %vm326, %v317, %v325
        %vm328 = vcmp.eq.f32.partialorder %v317, 0.0
        %v329 = vand.u32 %v317, 2147483648
        %v330 = vsel %vm328, %v329, %v327
        %v331 = vrsqrt.pop %v318
        %v332 = vmul.f32 %v331, %v318
        %v333 = vmul.f32 %v332, %v331
        %v334 = vmul.f32 0.5, %v333
        %v335 = vsub.f32 1.5, %v334
        %v336 = vmul.f32 %v331, %v335
        %v337 = vmul.f32 %v318, %v336
        %vm338 = vcmp.eq.f32.partialorder %v318, inf
        %v339 = vsel %vm338, %v318, %v337
        %vm340 = vcmp.eq.f32.partialorder %v318, 0.0
        %v341 = vand.u32 %v318, 2147483648
        %v342 = vsel %vm340, %v341, %v339
        %v343 = vmul.f32 %v330, -10.0
        %v344 = vmul.f32 %v342, -10.0
        %v345 = vmul.f32 %v343, 1.442695
        %v346 = vpow.pop %v345
        %v347 = vmul.f32 %v344, 1.442695
        %v348 = vpow.pop %v347
        %v349 = vadd.f32 %v303, %v346
        %v350 = vadd.f32 %v304, %v348
        %s351 = sadd.s32 %s213, 6
        %s352 = sld [smem:[#allocation2 + %s351]]
        %s353 = sadd.s32 %s213, 7
        %s354 = sld [smem:[#allocation2 + %s353]]
        %v355 = vstv %s352
        %v356 = vsub.f32 %v355, %v209
        %v357 = vsub.f32 %v355, %v210
        %v358 = vstv %s354
        %v359 = vsub.f32 %v358, %v212
        %v360 = vmul.f32 %v356, %v356
        %v361 = vmul.f32 %v357, %v357
        %v362 = vmul.f32 %v359, %v359
        %v363 = vadd.f32 %v360, %v362
        %v364 = vadd.f32 %v361, %v362
        %v365 = vrsqrt.pop %v363
        %v366 = vmul.f32 %v365, %v363
        %v367 = vmul.f32 %v366, %v365
        %v368 = vmul.f32 0.5, %v367
        %v369 = vsub.f32 1.5, %v368
        %v370 = vmul.f32 %v365, %v369
        %v371 = vmul.f32 %v363, %v370
        %vm372 = vcmp.eq.f32.partialorder %v363, inf
        %v373 = vsel %vm372, %v363, %v371
        %vm374 = vcmp.eq.f32.partialorder %v363, 0.0
        %v375 = vand.u32 %v363, 2147483648
        %v376 = vsel %vm374, %v375, %v373
        %v377 = vrsqrt.pop %v364
        %v378 = vmul.f32 %v377, %v364
        %v379 = vmul.f32 %v378, %v377
        %v380 = vmul.f32 0.5, %v379
        %v381 = vsub.f32 1.5, %v380
        %v382 = vmul.f32 %v377, %v381
        %v383 = vmul.f32 %v364, %v382
        %vm384 = vcmp.eq.f32.partialorder %v364, inf
        %v385 = vsel %vm384, %v364, %v383
        %vm386 = vcmp.eq.f32.partialorder %v364, 0.0
        %v387 = vand.u32 %v364, 2147483648
        %v388 = vsel %vm386, %v387, %v385
        %v389 = vmul.f32 %v376, -10.0
        %v390 = vmul.f32 %v388, -10.0
        %v391 = vmul.f32 %v389, 1.442695
        %v392 = vpow.pop %v391
        %v393 = vmul.f32 %v390, 1.442695
        %v394 = vpow.pop %v393
        %v395 = vadd.f32 %v349, %v392
        %v396 = vadd.f32 %v350, %v394
        %s397 = sadd.s32 %s213, 8
        %s398 = sld [smem:[#allocation2 + %s397]]
        %s399 = sadd.s32 %s213, 9
        %s400 = sld [smem:[#allocation2 + %s399]]
        %v401 = vstv %s398
        %v402 = vsub.f32 %v401, %v209
        %v403 = vsub.f32 %v401, %v210
        %v404 = vstv %s400
        %v405 = vsub.f32 %v404, %v212
        %v406 = vmul.f32 %v402, %v402
        %v407 = vmul.f32 %v403, %v403
        %v408 = vmul.f32 %v405, %v405
        %v409 = vadd.f32 %v406, %v408
        %v410 = vadd.f32 %v407, %v408
        %v411 = vrsqrt.pop %v409
        %v412 = vmul.f32 %v411, %v409
        %v413 = vmul.f32 %v412, %v411
        %v414 = vmul.f32 0.5, %v413
        %v415 = vsub.f32 1.5, %v414
        %v416 = vmul.f32 %v411, %v415
        %v417 = vmul.f32 %v409, %v416
        %vm418 = vcmp.eq.f32.partialorder %v409, inf
        %v419 = vsel %vm418, %v409, %v417
        %vm420 = vcmp.eq.f32.partialorder %v409, 0.0
        %v421 = vand.u32 %v409, 2147483648
        %v422 = vsel %vm420, %v421, %v419
        %v423 = vrsqrt.pop %v410
        %v424 = vmul.f32 %v423, %v410
        %v425 = vmul.f32 %v424, %v423
        %v426 = vmul.f32 0.5, %v425
        %v427 = vsub.f32 1.5, %v426
        %v428 = vmul.f32 %v423, %v427
        %v429 = vmul.f32 %v410, %v428
        %vm430 = vcmp.eq.f32.partialorder %v410, inf
        %v431 = vsel %vm430, %v410, %v429
        %vm432 = vcmp.eq.f32.partialorder %v410, 0.0
        %v433 = vand.u32 %v410, 2147483648
        %v434 = vsel %vm432, %v433, %v431
        %v435 = vmul.f32 %v422, -10.0
        %v436 = vmul.f32 %v434, -10.0
        %v437 = vmul.f32 %v435, 1.442695
        %v438 = vpow.pop %v437
        %v439 = vmul.f32 %v436, 1.442695
        %v440 = vpow.pop %v439
        %v441 = vadd.f32 %v395, %v438
        %v442 = vadd.f32 %v396, %v440
        %v443 = vld [vmem:[%s173] sm:$0xff]
        %v444 = vld [vmem:[%s173 + $0x8] sm:$0xff]
        %v445 = vld [vmem:[%s173 + $0x10] sm:$0xff]
        %v446 = vld [vmem:[%s173 + $0x18] sm:$0xff]
        %v447 = vld [vmem:[%s173 + $0x20] sm:$0xff]
        %v448 = vld [vmem:[%s173 + $0x28] sm:$0xff]
        %v449 = vmul.f32 %v443, %v441
        %v450 = vmul.f32 %v444, %v442
        %v451 = vmul.f32 %v445, %v441
        %v452 = vmul.f32 %v446, %v442
        %v453 = vmul.f32 %v447, %v441
        %v454 = vmul.f32 %v448, %v442
        %vm455 = vcmask 130048
        %456 = vst.msk [vmem:[%s195] sm:$0xff] %vm455, %v449
        %457 = vst.msk [vmem:[%s195 + $0x8] sm:$0xff] %vm455, %v450
        %458 = vst.msk [vmem:[%s195 + $0x10] sm:$0xff] %vm455, %v451
        %459 = vst.msk [vmem:[%s195 + $0x18] sm:$0xff] %vm455, %v452
        %460 = vst.msk [vmem:[%s195 + $0x20] sm:$0xff] %vm455, %v453
        %461 = vst.msk [vmem:[%s195 + $0x28] sm:$0xff] %vm455, %v454
        %s462 = sand.u32 %s91, 1
        %s463 = scalar_lea.sflag [#allocation4], %s462
        %s464 = sand.u32 %s91, 1
        %s465 = smul.addr %s464, 48
        %s466 = scalar_lea.vmem [#allocation7], %s465
        // Predicated region
        $region37: #{tpu_custom_call.1} parent=27 // pred_check
          %p467 = pneg %p101
        $region38: #{tpu_custom_call.1} parent=27 // pred_check_branch
          %469 = sbr.rel (%p467) target = $region40
        $region39: #{tpu_custom_call.1} parent=27 // pred_region
          %s470 = smul.u32 2, %s25
          %472 = vsyncadd %s463, 0
          %s473 = smul.addr %s24, 6
          %s474 = sadd.s32 %s470, %s473
          %s475 = smul.addr %s474, 8
          %s476 = scalar_lea.hbm %s2, %s475
          %s477 = sshll.u32 %s466, 4
          %s478 = int_to_ptr.vmem [resolvable:$true] %s477
          %s479 = sshll.u32 %s476, 4
          %s480 = int_to_ptr.hbm [resolvable:$true] %s479
          %485 = dma.vmem_to_hbm [thread:$0]  %s478, 768, %s480, %s463, 128, 128, 8
        $region40: #{tpu_custom_call.1} parent=27 // pred_fallthru
          _
      $region28: #{tpu_custom_call.1} parent=5 // pred_fallthru
        _
      %p486 = scmp.le.s32.totalorder 2, %s15
      // Predicated region
      $region41: #{tpu_custom_call.1} parent=5 // pred_check
        %p487 = pneg %p486
      $region42: #{tpu_custom_call.1} parent=5 // pred_check_branch
        %489 = sbr.rel (%p487) target = $region44
      $region43: #{tpu_custom_call.1} parent=5 // pred_region
        %s490 = ssub.s32 %s15, 2
        // Predicated region
        $region45: #{tpu_custom_call.1} parent=43 // pred_check
          %p491 = pneg %p107
        $region46: #{tpu_custom_call.1} parent=43 // pred_check_branch
          %493 = sbr.rel (%p491) target = $region48
        $region47: #{tpu_custom_call.1} parent=43 // pred_region
          %s494 = sand.u32 %s92, 1
          %s495 = scalar_lea.sflag [#allocation4], %s494
          %s496 = sand.u32 %s92, 1
          %s497 = smul.addr %s496, 48
          %s498 = scalar_lea.vmem [#allocation7], %s497
          %500 = dma.done %s495, 768
        $region48: #{tpu_custom_call.1} parent=43 // pred_fallthru
          _
      $region44: #{tpu_custom_call.1} parent=5 // pred_fallthru
        _
    $region6: #{tpu_custom_call.1} parent=1 // loop_footer
      %s19 = sadd.s32 1, %s15
    $region7: #{tpu_custom_call.1} parent=1 // loop_footer_branch
      %14 = sbr.rel target = $region3
    $region8: #{tpu_custom_call.1} parent=1 // loop_exit
      _
    %501 = vsyncpa [#allocation3], 1
    %s502 = scalar_lea.sflag [#allocation3], 1
    %503 = vsyncpa %s502, 1
    %504 = vsyncpa [#allocation4], 1
    %s505 = scalar_lea.sflag [#allocation4], 1
    %506 = vsyncpa %s505, 1
    %507 = vsyncpa [#allocation5], 1
    %s508 = scalar_lea.sflag [#allocation5], 1
    %509 = vsyncpa %s508, 1

</llo_original>
